<compile_context>
chip_gen: v7x
topology: tpu7x:2x2x1
jax: 0.10.0
libtpu: 0.0.40
codegen_flags: <defaults>
</compile_context>

<pallas_src>
import functools

import jax
import jax.numpy as jnp
from jax import lax
from jax.experimental import pallas as pl
from jax.experimental.pallas import tpu as pltpu


def _round_up(x, m):
    return (x + m - 1) // m * m


# -------- pass 1: conv as im2col matmul + per-tile BN partial stats ----------
def _conv_stats_kernel(p_ref, w_ref, y_ref, stats_ref):
    # p_ref: (TM, Kp) bf16   w_ref: (Kp, Coutp) bf16
    y = jnp.dot(p_ref[...], w_ref[...], preferred_element_type=jnp.float32)
    y_ref[...] = y                                            # (TM, Coutp) f32
    s1 = jnp.sum(y, axis=0, keepdims=True)                    # (1, Coutp)
    s2 = jnp.sum(y * y, axis=0, keepdims=True)                # (1, Coutp)
    stats_ref[...] = jnp.concatenate([s1, s2], axis=0)[None]  # (1, 2, Coutp)


# -------- pass 2: BN apply (scale/shift) + LeakyReLU + dropout ----------------
def _bn_act_drop_kernel(seed_ref, y_ref, scale_ref, shift_ref, out_ref, *,
                        tm, coutp, negative_slope, keep_threshold):
    i = pl.program_id(0)
    y = y_ref[...]                                            # (TM, Coutp) f32
    # scale/shift already include the folded dropout scale 1/(1-p).
    z = y * scale_ref[...] + shift_ref[...]
    z = jnp.where(z >= 0.0, z, negative_slope * z)            # LeakyReLU(0.01)

    # Stateless hash PRNG: unique counter per global output element.
    row = lax.broadcasted_iota(jnp.int32, (tm, coutp), 0) + i * tm
    col = lax.broadcasted_iota(jnp.int32, (tm, coutp), 1)
    h = (row * coutp + col).astype(jnp.uint32)
    h = h + seed_ref[0].astype(jnp.uint32) * jnp.uint32(0x9E3779B9)
    # murmur3 fmix32 avalanche
    h = jnp.bitwise_xor(h, jnp.right_shift(h, jnp.uint32(16)))
    h = h * jnp.uint32(0x85EBCA6B)
    h = jnp.bitwise_xor(h, jnp.right_shift(h, jnp.uint32(13)))
    h = h * jnp.uint32(0xC2B2AE35)
    h = jnp.bitwise_xor(h, jnp.right_shift(h, jnp.uint32(16)))
    keep = h < jnp.uint32(keep_threshold)                     # P(keep) = 1-p

    out_ref[...] = jnp.where(keep, z, 0.0)


def conv_drop_acgan(x, weight, gamma, beta, seed, *, stride, padding, bn=True,
                    drop_p=0.5, eps=1e-5, tm=512):
    """x: (N, Cin, H, W) f32 (NCHW, like the PyTorch module).
       weight: (Cout, Cin, 3, 3) f32.  Returns (N, Cout, Ho, Wo) f32."""
    N, Cin, H, W = x.shape
    Cout = weight.shape[0]
    Ho = (H + 2 * padding - 3) // stride + 1
    Wo = (W + 2 * padding - 3) // stride + 1

    M = N * Ho * Wo
    K = 9 * Cin
    Coutp = _round_up(Cout, 128)          # lane-dense output / MXU N dim
    Kp = _round_up(K, 128)                # lane-dense contraction (zero pad)
    TM = min(tm, _round_up(M, 8))         # rows per tile (sublane-aligned)
    Mp = _round_up(M, TM)
    nM = Mp // TM

    # ---- wrapper glue: NCHW -> NHWC, pad, im2col patches (see TODOs above) --
    xn = jnp.transpose(x, (0, 2, 3, 1))
    xp = jnp.pad(xn, ((0, 0), (padding, padding), (padding, padding), (0, 0)))
    cols = []
    for kh in range(3):
        for kw in range(3):
            cols.append(xp[:, kh:kh + stride * (Ho - 1) + 1:stride,
                              kw:kw + stride * (Wo - 1) + 1:stride, :])
    patches = jnp.stack(cols, axis=3).reshape(M, K)
    # Zero-pad rows (they contribute 0 to the BN sums) and the K lanes; cast
    # matmul operands to bf16 (MXU-native), accumulate in f32.
    patches = jnp.pad(patches, ((0, Mp - M), (0, Kp - K))).astype(jnp.bfloat16)

    # weight (Cout,Cin,3,3) -> (kh,kw,Cin,Cout) -> (K,Cout) -> (Kp,Coutp)
    w2 = jnp.transpose(weight, (2, 3, 1, 0)).reshape(K, Cout)
    w2 = jnp.pad(w2, ((0, Kp - K), (0, Coutp - Cout))).astype(jnp.bfloat16)

    # ---- pass 1: tiled matmul + partial stats --------------------------------
    y, stats = pl.pallas_call(
        _conv_stats_kernel,
        out_shape=(jax.ShapeDtypeStruct((Mp, Coutp), jnp.float32),
                   jax.ShapeDtypeStruct((nM, 2, Coutp), jnp.float32)),
        grid_spec=pltpu.PrefetchScalarGridSpec(
            num_scalar_prefetch=0,
            grid=(nM,),
            in_specs=[pl.BlockSpec((TM, Kp), lambda i: (i, 0)),
                      pl.BlockSpec((Kp, Coutp), lambda i: (0, 0))],
            out_specs=(pl.BlockSpec((TM, Coutp), lambda i: (i, 0)),
                       pl.BlockSpec((1, 2, Coutp), lambda i: (i, 0, 0))),
        ),
        compiler_params=pltpu.CompilerParams(
            dimension_semantics=("parallel",),
            vmem_limit_bytes=32 * 1024 * 1024),
    )(patches, w2)

    # ---- fold BN (batch stats) + dropout scale into a single scale/shift ----
    s = 1.0 / (1.0 - drop_p)
    gamma_p = jnp.pad(gamma.astype(jnp.float32), (0, Coutp - Cout))
    beta_p = jnp.pad(beta.astype(jnp.float32), (0, Coutp - Cout))
    if bn:
        tot = jnp.sum(stats, axis=0)                           # (2, Coutp)
        mean = tot[0] / M                                      # true M divisor
        var = jnp.maximum(tot[1] / M - mean * mean, 0.0)       # biased (training)
        inv = lax.rsqrt(var + eps)
        scale = gamma_p * inv * s
        shift = (beta_p - gamma_p * mean * inv) * s
    else:
        scale = jnp.full((Coutp,), s, jnp.float32)
        shift = jnp.zeros((Coutp,), jnp.float32)
    scale = scale.reshape(1, Coutp)
    shift = shift.reshape(1, Coutp)

    # ---- pass 2: BN apply + LeakyReLU + dropout ------------------------------
    keep_threshold = min(int(round((1.0 - drop_p) * 4294967296.0)), 0xFFFFFFFF)
    seed_arr = jnp.asarray([seed], dtype=jnp.int32)
    kernel2 = functools.partial(_bn_act_drop_kernel, tm=TM, coutp=Coutp,
                                negative_slope=0.01,
                                keep_threshold=keep_threshold)
    out_flat = pl.pallas_call(
        kernel2,
        out_shape=jax.ShapeDtypeStruct((Mp, Coutp), jnp.float32),
        grid_spec=pltpu.PrefetchScalarGridSpec(
            num_scalar_prefetch=1,
            grid=(nM,),
            in_specs=[pl.BlockSpec((TM, Coutp), lambda i, s_: (i, 0)),
                      pl.BlockSpec((1, Coutp), lambda i, s_: (0, 0)),
                      pl.BlockSpec((1, Coutp), lambda i, s_: (0, 0))],
            out_specs=pl.BlockSpec((TM, Coutp), lambda i, s_: (i, 0)),
        ),
        compiler_params=pltpu.CompilerParams(
            dimension_semantics=("parallel",),
            vmem_limit_bytes=32 * 1024 * 1024),
    )(seed_arr, y, scale, shift)

    # ---- glue: slice off padding, (M, Cout) -> NCHW --------------------------
    out = out_flat[:M, :Cout].reshape(N, Ho, Wo, Cout)
    return jnp.transpose(out, (0, 3, 1, 2))


if __name__ == "__main__":
    key = jax.random.PRNGKey(0)
    k_x, k_w = jax.random.split(key)

    # Small shapes consistent with the module: batch=2, inp=4, oup=8,
    # spatial=16, stride=2, padding=1, bn=True.
    N, Cin, Cout, H, W = 2, 4, 8, 16, 16
    stride, padding = 2, 1

    x = jax.random.normal(k_x, (N, Cin, H, W), dtype=jnp.float32)
    weight = 0.1 * jax.random.normal(k_w, (Cout, Cin, 3, 3), dtype=jnp.float32)
    gamma = jnp.ones((Cout,), dtype=jnp.float32)   # BatchNorm2d default init
    beta = jnp.zeros((Cout,), dtype=jnp.float32)

    # tm=64 so the small example exercises the multi-tile (grid > 1) path.
    out = conv_drop_acgan(x, weight, gamma, beta, seed=0,
                          stride=stride, padding=padding, bn=True, tm=64)
    out = jax.block_until_ready(out)

    Ho = (H + 2 * padding - 3) // stride + 1
    Wo = (W + 2 * padding - 3) // stride + 1
    assert out.shape == (N, Cout, Ho, Wo)
    assert bool(jnp.all(jnp.isfinite(out)))
    print("KERNEL_OK")
</pallas_src>

<mosaic_0001>
module attributes {stable_mosaic.version = 11 : i64} {
  func.func @_conv_stats_kernel(%arg0: i32, %arg1: memref<64x128xbf16, #tpu.memory_space<vmem>>, %arg2: memref<128x128xbf16, #tpu.memory_space<vmem>>, %arg3: memref<64x128xf32, #tpu.memory_space<vmem>>, %arg4: memref<1x2x128xf32, #tpu.memory_space<vmem>>) attributes {dimension_semantics = [#tpu.dimension_semantics<parallel>], iteration_bounds = array<i64: 2>, scalar_prefetch = 0 : i64, scratch_operands = 0 : i64, tpu.core_type = #tpu.core_type<tc>, window_params = [{transform_indices = @transform_0, window_bounds = array<i64: 64, 128>}, {pipeline_mode = #tpu.pipeline_mode<synchronous>, transform_indices = @transform_1, window_bounds = array<i64: 128, 128>}, {transform_indices = @transform_2, window_bounds = array<i64: 64, 128>}, {transform_indices = @transform_3, window_bounds = array<i64: 1, 2, 128>}]} {
    %c0 = arith.constant 0 : index
    %c0_0 = arith.constant 0 : index
    %0 = vector.load %arg1[%c0, %c0_0] : memref<64x128xbf16, #tpu.memory_space<vmem>>, vector<64x128xbf16>
    %c0_1 = arith.constant 0 : index
    %c0_2 = arith.constant 0 : index
    %1 = vector.load %arg2[%c0_1, %c0_2] : memref<128x128xbf16, #tpu.memory_space<vmem>>, vector<128x128xbf16>
    %cst = arith.constant dense<0.000000e+00> : vector<64x128xf32>
    %2 = tpu.matmul %0, %1, %cst {dimension_numbers = #tpu.dot_dimension_numbers<[1], [0], [0], [1], [0, 0, 1, 1], [], []>} : vector<64x128xbf16>, vector<128x128xbf16>, vector<64x128xf32> -> vector<64x128xf32>
    %c0_3 = arith.constant 0 : index
    %c0_4 = arith.constant 0 : index
    %3 = vector.load %arg3[%c0_3, %c0_4] : memref<64x128xf32, #tpu.memory_space<vmem>>, vector<64x128xf32>
    tpu.vector_store %arg3[%c0_3, %c0_4], %2 {strides = array<i32>} : memref<64x128xf32, #tpu.memory_space<vmem>>, vector<64x128xf32>,
    %cst_5 = arith.constant dense<0.000000e+00> : vector<128xf32>
    %4 = vector.multi_reduction <add>, %2, %cst_5 [0] : vector<64x128xf32> to vector<128xf32>
    %5 = vector.shape_cast %4 : vector<128xf32> to vector<1x128xf32>
    %6 = arith.mulf %2, %2 : vector<64x128xf32>
    %cst_6 = arith.constant dense<0.000000e+00> : vector<128xf32>
    %7 = vector.multi_reduction <add>, %6, %cst_6 [0] : vector<64x128xf32> to vector<128xf32>
    %8 = vector.shape_cast %7 : vector<128xf32> to vector<1x128xf32>
    %9 = tpu.concatenate %5, %8 in 0 : vector<1x128xf32>, vector<1x128xf32> -> vector<2x128xf32>
    %10 = vector.shape_cast %9 : vector<2x128xf32> to vector<1x2x128xf32>
    %c0_7 = arith.constant 0 : index
    %c0_8 = arith.constant 0 : index
    %c0_9 = arith.constant 0 : index
    %11 = vector.load %arg4[%c0_7, %c0_8, %c0_9] : memref<1x2x128xf32, #tpu.memory_space<vmem>>, vector<1x2x128xf32>
    tpu.vector_store %arg4[%c0_7, %c0_8, %c0_9], %10 {strides = array<i32>} : memref<1x2x128xf32, #tpu.memory_space<vmem>>, vector<1x2x128xf32>,
    return
  }
  func.func @transform_0(%arg0: i32) -> (i32, i32) {
    %c0_i32 = arith.constant 0 : i32
    %c0_i32_0 = arith.constant 0 : i32
    return %arg0, %c0_i32 : i32, i32
  }
  func.func @transform_1(%arg0: i32) -> (i32, i32) {
    %c0_i32 = arith.constant 0 : i32
    %c0_i32_0 = arith.constant 0 : i32
    %c0_i32_1 = arith.constant 0 : i32
    return %c0_i32, %c0_i32_0 : i32, i32
  }
  func.func @transform_2(%arg0: i32) -> (i32, i32) {
    %c0_i32 = arith.constant 0 : i32
    %c0_i32_0 = arith.constant 0 : i32
    return %arg0, %c0_i32 : i32, i32
  }
  func.func @transform_3(%arg0: i32) -> (i32, i32, i32) {
    %c0_i32 = arith.constant 0 : i32
    %c0_i32_0 = arith.constant 0 : i32
    %c0_i32_1 = arith.constant 0 : i32
    return %arg0, %c0_i32, %c0_i32_0 : i32, i32, i32
  }
}

</mosaic_0001>

<llo_original>
// kernel: tpu_custom_call.1
$region0: #{tpu_custom_call.1}
  #allocation0 [shape = 'u32[]', space=smem, size = 0x4, offset = 0x4, fixed_abs, tag = 'smem constant byte address 0x4 - core index']
  #allocation1 [shape = 'u32[144,128]{1,0:T(1,128)}', space=vmem, size = 0x12000, scoped, tag = 'internal scratch']
  %s0 = inlined_call_operand.hbm [shape: bf16[128,128], index: 0, kind: input, shape index: {}]
  %s1 = inlined_call_operand.hbm [shape: bf16[128,128], index: 1, kind: input, shape index: {}]
  %s2 = inlined_call_operand.hbm [shape: f32[128,128], index: 2, kind: output, shape index: {0}]
  %s3 = inlined_call_operand.hbm [shape: f32[2,2,128], index: 3, kind: output, shape index: {1}]
  %4 = xla_tuple %s2, %s3
  %s5 = sld [smem:[#allocation0]]
  $region57: #{tpu_custom_call.1} parent=0
    _
  %s7 = ssub.s32 1, %s5
  %s8 = scalar_select 0, %s7, %s5
  $region1: #{tpu_custom_call.1} parent=0
    #allocation2 [shape = 'u8[32768]{0}', space=vmem, size = 0x8000, scoped, tag = 'input window, operand 0']
    #allocation3 [shape = 's32[2]{0}', space=sflag, size = 0x8, scoped, tag = 'scoped memory for tpu_custom_call.1']
    #allocation4 [shape = 's32[2]{0}', space=sflag, size = 0x8, scoped, tag = 'scoped memory for tpu_custom_call.1']
    #allocation5 [shape = 'u8[32768]{0}', space=vmem, size = 0x8000, scoped, tag = 'input window, operand 1, single buffered']
    #allocation6 [shape = 's32[1]{0}', space=sflag, size = 0x4, scoped, tag = 'scoped memory for tpu_custom_call.1']
    #allocation7 [shape = 'u8[65536]{0}', space=vmem, size = 0x10000, scoped, tag = 'output window, operand 0']
    #allocation8 [shape = 'u8[2048]{0}', space=vmem, size = 0x800, scoped, tag = 'output window, operand 1']
    #allocation9 [shape = 's32[2]{0}', space=sflag, size = 0x8, scoped, tag = 'scoped memory for tpu_custom_call.1']
    %9 = vsyncpa [#allocation3], 0
    %s10 = scalar_lea.sflag [#allocation3], 1
    %11 = vsyncpa %s10, 0
    %12 = vsyncpa [#allocation6], 0
    %13 = vsyncpa [#allocation4], 0
    %s14 = scalar_lea.sflag [#allocation4], 1
    %15 = vsyncpa %s14, 0
    %16 = vsyncpa [#allocation9], 0
    %s17 = scalar_lea.sflag [#allocation9], 1
    %18 = vsyncpa %s17, 0
    loop: start=0, step=1, limit=4
    $region2: #{tpu_custom_call.1} parent=1 // loop_pre_header
      _
    $region3: #{tpu_custom_call.1} parent=1 // loop_header
      %s20 = sphi 0, %s24
      %p21 = scmp.ge.s32.totalorder %s20, 4
      %s30 = sphi 0, %s32
      %s33 = sphi 0, %s30
      %s34 = sphi 0, %s33
      %s50 = sphi 0, %s34
      %s54 = sphi 0, %s54
      %s56 = sphi 0, %s54
      %s57 = sphi 0, %s56
      %s71 = sphi 0, %s57
      %s77 = sphi 0, %s79
      %s80 = sphi 0, %s77
      %s81 = sphi 0, %s80
      %s97 = sphi 0, %s81
      %s103 = sphi 0, %s105
      %s106 = sphi 0, %s103
      %s107 = sphi 0, %s106
      %s123 = sphi 0, %s107
    $region4: #{tpu_custom_call.1} parent=1 // loop_header_branch
      %23 = sbr.rel (%p21) target = $region8
    $region5: #{tpu_custom_call.1} parent=1 // loop_body
      %s25 = ssub.s32 %s20, 1
      %s26 = ssub.s32 %s20, 2
      %s27 = sadd.s32 %s20, 1
      %s28 = ssub.s32 %s20, %s27
      %p29 = scmp.eq.s32.totalorder %s28, 0
      %s31 = sadd.s32 %s30, 1
      %s32 = scalar_select %p29, %s30, %s31
      %p35 = pneg %p29
      %p36 = scmp.eq.s32.totalorder %s20, 1
      %p37 = por %p35, %p36
      %p38 = scmp.ne.s32.totalorder %s30, %s33
      %p39 = scmp.eq.s32.totalorder %s20, 0
      %p40 = por %p38, %p39
      %p41 = scmp.ne.s32.totalorder %s30, %s33
      %p42 = scmp.eq.s32.totalorder %s25, 1
      %p43 = por %p41, %p42
      %p44 = scmp.ne.s32.totalorder %s33, %s34
      %p45 = scmp.eq.s32.totalorder %s25, 0
      %p46 = por %p44, %p45
      %p47 = scmp.ne.s32.totalorder %s33, %s34
      %p48 = scmp.eq.s32.totalorder %s26, 1
      %p49 = por %p47, %p48
      %p51 = scmp.ne.s32.totalorder %s34, %s50
      %p52 = scmp.eq.s32.totalorder %s26, 0
      %p53 = por %p51, %p52
      %s55 = sadd.s32 %s54, 1
      %p58 = scmp.eq.s32.totalorder %s20, 1
      %p59 = scmp.ne.s32.totalorder %s54, %s56
      %p60 = scmp.eq.s32.totalorder %s20, 0
      %p61 = por %p59, %p60
      %p62 = scmp.ne.s32.totalorder %s54, %s56
      %p63 = scmp.eq.s32.totalorder %s25, 1
      %p64 = por %p62, %p63
      %p65 = scmp.ne.s32.totalorder %s56, %s57
      %p66 = scmp.eq.s32.totalorder %s25, 0
      %p67 = por %p65, %p66
      %p68 = scmp.ne.s32.totalorder %s56, %s57
      %p69 = scmp.eq.s32.totalorder %s26, 1
      %p70 = por %p68, %p69
      %p72 = scmp.ne.s32.totalorder %s57, %s71
      %p73 = scmp.eq.s32.totalorder %s26, 0
      %p74 = por %p72, %p73
      %s75 = ssub.s32 %s20, %s27
      %p76 = scmp.eq.s32.totalorder %s75, 0
      %s78 = sadd.s32 %s77, 1
      %s79 = scalar_select %p76, %s77, %s78
      %p82 = pneg %p76
      %p83 = scmp.eq.s32.totalorder %s20, 1
      %p84 = por %p82, %p83
      %p85 = scmp.ne.s32.totalorder %s77, %s80
      %p86 = scmp.eq.s32.totalorder %s20, 0
      %p87 = por %p85, %p86
      %p88 = scmp.ne.s32.totalorder %s77, %s80
      %p89 = scmp.eq.s32.totalorder %s25, 1
      %p90 = por %p88, %p89
      %p91 = scmp.ne.s32.totalorder %s80, %s81
      %p92 = scmp.eq.s32.totalorder %s25, 0
      %p93 = por %p91, %p92
      %p94 = scmp.ne.s32.totalorder %s80, %s81
      %p95 = scmp.eq.s32.totalorder %s26, 1
      %p96 = por %p94, %p95
      %p98 = scmp.ne.s32.totalorder %s81, %s97
      %p99 = scmp.eq.s32.totalorder %s26, 0
      %p100 = por %p98, %p99
      %s101 = ssub.s32 %s20, %s27
      %p102 = scmp.eq.s32.totalorder %s101, 0
      %s104 = sadd.s32 %s103, 1
      %s105 = scalar_select %p102, %s103, %s104
      %p108 = pneg %p102
      %p109 = scmp.eq.s32.totalorder %s20, 1
      %p110 = por %p108, %p109
      %p111 = scmp.ne.s32.totalorder %s103, %s106
      %p112 = scmp.eq.s32.totalorder %s20, 0
      %p113 = por %p111, %p112
      %p114 = scmp.ne.s32.totalorder %s103, %s106
      %p115 = scmp.eq.s32.totalorder %s25, 1
      %p116 = por %p114, %p115
      %p117 = scmp.ne.s32.totalorder %s106, %s107
      %p118 = scmp.eq.s32.totalorder %s25, 0
      %p119 = por %p117, %p118
      %p120 = scmp.ne.s32.totalorder %s106, %s107
      %p121 = scmp.eq.s32.totalorder %s26, 1
      %p122 = por %p120, %p121
      %p124 = scmp.ne.s32.totalorder %s107, %s123
      %p125 = scmp.eq.s32.totalorder %s26, 0
      %p126 = por %p124, %p125
      %p127 = scmp.le.s32.totalorder 1, %s20
      %p128 = scmp.lt.s32.totalorder %s20, 3
      %p129 = pnand %p127, %p128
      %p130 = pneg %p129
      // Predicated region
      $region9: #{tpu_custom_call.1} parent=5 // pred_check
        _
      $region10: #{tpu_custom_call.1} parent=5 // pred_check_branch
        %132 = sbr.rel (%p129) target = $region12
      $region11: #{tpu_custom_call.1} parent=5 // pred_region
        %s133 = ssub.s32 %s20, 1
        // Predicated region
        $region13: #{tpu_custom_call.1} parent=11 // pred_check
          %p134 = pneg %p67
        $region14: #{tpu_custom_call.1} parent=11 // pred_check_branch
          %136 = sbr.rel (%p134) target = $region16
        $region15: #{tpu_custom_call.1} parent=11 // pred_region
          %s138 = ssub.s32 1024, 1024
          %139 = vsyncadd [#allocation6], %s138
          %s140 = sshll.u32 [#allocation5], 4
          %s141 = int_to_ptr.vmem [resolvable:$true] %s140
          %146 = dma.hbm_to_vmem [thread:$0]  %s1, 1024, %s141, [#allocation6], 64, 64, 4
        $region16: #{tpu_custom_call.1} parent=11 // pred_fallthru
          _
      $region12: #{tpu_custom_call.1} parent=5 // pred_fallthru
        _
      %p147 = scmp.lt.s32.totalorder %s20, 2
      // Predicated region
      $region17: #{tpu_custom_call.1} parent=5 // pred_check
        %p148 = pneg %p147
      $region18: #{tpu_custom_call.1} parent=5 // pred_check_branch
        %150 = sbr.rel (%p148) target = $region20
      $region19: #{tpu_custom_call.1} parent=5 // pred_region
        // Predicated region
        $region21: #{tpu_custom_call.1} parent=19 // pred_check
          %p151 = pneg %p40
        $region22: #{tpu_custom_call.1} parent=19 // pred_check_branch
          %153 = sbr.rel (%p151) target = $region24
        $region23: #{tpu_custom_call.1} parent=19 // pred_region
          %s154 = sand.u32 %s30, 1
          %s155 = scalar_lea.sflag [#allocation3], %s154
          %s156 = sand.u32 %s30, 1
          %s157 = smul.addr %s156, 32
          %s158 = scalar_lea.vmem [#allocation2], %s157
          %s159 = smul.u32 8, %s20
          %s161 = ssub.s32 512, 512
          %162 = vsyncadd %s155, %s161
          %s163 = smul.addr %s159, 64
          %s164 = scalar_lea.hbm %s0, %s163
          %s165 = sshll.u32 %s158, 4
          %s166 = int_to_ptr.vmem [resolvable:$true] %s165
          %171 = dma.hbm_to_vmem [thread:$0]  %s164, 512, %s166, %s155, 64, 64, 4
        $region24: #{tpu_custom_call.1} parent=19 // pred_fallthru
          _
      $region20: #{tpu_custom_call.1} parent=5 // pred_fallthru
        _
      %p172 = scmp.le.s32.totalorder 1, %s20
      %p173 = scmp.lt.s32.totalorder %s20, 3
      %p174 = pnand %p172, %p173
      %p175 = pneg %p174
      // Predicated region
      $region25: #{tpu_custom_call.1} parent=5 // pred_check
        _
      $region26: #{tpu_custom_call.1} parent=5 // pred_check_branch
        %177 = sbr.rel (%p174) target = $region28
      $region27: #{tpu_custom_call.1} parent=5 // pred_region
        %s178 = ssub.s32 %s20, 1
        %s179 = sand.u32 %s33, 1
        %s180 = scalar_lea.sflag [#allocation3], %s179
        %s181 = sand.u32 %s33, 1
        %s182 = smul.addr %s181, 32
        %s183 = scalar_lea.vmem [#allocation2], %s182
        // Predicated region
        $region29: #{tpu_custom_call.1} parent=27 // pred_check
          %p184 = pneg %p46
        $region30: #{tpu_custom_call.1} parent=27 // pred_check_branch
          %186 = sbr.rel (%p184) target = $region32
        $region31: #{tpu_custom_call.1} parent=27 // pred_region
          %187 = dma.done %s180, 512
        $region32: #{tpu_custom_call.1} parent=27 // pred_fallthru
          _
        // Predicated region
        $region33: #{tpu_custom_call.1} parent=27 // pred_check
          %p188 = pneg %p67
        $region34: #{tpu_custom_call.1} parent=27 // pred_check_branch
          %190 = sbr.rel (%p188) target = $region36
        $region35: #{tpu_custom_call.1} parent=27 // pred_region
          %191 = dma.done [#allocation6], 1024
        $region36: #{tpu_custom_call.1} parent=27 // pred_fallthru
          _
        %s192 = sand.u32 %s33, 1
        %s193 = scalar_lea.sflag [#allocation3], %s192
        %s194 = sand.u32 %s33, 1
        %s195 = smul.addr %s194, 32
        %s196 = scalar_lea.vmem [#allocation2], %s195
        %p197 = pneg %p46
        %p198 = pneg %p43
        %p199 = pneg %p67
        %p200 = pneg %p64
        %p201 = pneg %p93
        %p202 = pneg %p90
        %s203 = sand.u32 %s80, 1
        %s204 = scalar_lea.sflag [#allocation4], %s203
        %s205 = sand.u32 %s80, 1
        %s206 = smul.addr %s205, 64
        %s207 = scalar_lea.vmem [#allocation7], %s206
        %p208 = pneg %p119
        %p209 = pneg %p116
        %s210 = sand.u32 %s106, 1
        %s211 = scalar_lea.sflag [#allocation9], %s210
        %s212 = sand.u32 %s106, 1
        %s213 = smul.addr %s212, 2
        %s214 = scalar_lea.vmem [#allocation8], %s213
        %s215 = smul.u32 8, %s25
        %s216 = smul.u32 8, %s25
        %v218 = vld [vmem:[%s183] sm:$0xf]
        %v219 = vld [vmem:[%s183 + $0x4] sm:$0xf]
        %v220 = vld [vmem:[%s183 + $0x8] sm:$0xf]
        %v221 = vld [vmem:[%s183 + $0xc] sm:$0xf]
        %v222 = vld [vmem:[%s183 + $0x10] sm:$0xf]
        %v223 = vld [vmem:[%s183 + $0x14] sm:$0xf]
        %v224 = vld [vmem:[%s183 + $0x18] sm:$0xf]
        %v225 = vld [vmem:[%s183 + $0x1c] sm:$0xf]
        %v226 = vld [vmem:[#allocation5] sm:$0xf]
        %v227 = vld [vmem:[#allocation5 + $0x4] sm:$0xf]
        %v228 = vld [vmem:[#allocation5 + $0x8] sm:$0xf]
        %v229 = vld [vmem:[#allocation5 + $0xc] sm:$0xf]
        %v230 = vld [vmem:[#allocation5 + $0x10] sm:$0xf]
        %v231 = vld [vmem:[#allocation5 + $0x14] sm:$0xf]
        %v232 = vld [vmem:[#allocation5 + $0x18] sm:$0xf]
        %v233 = vld [vmem:[#allocation5 + $0x1c] sm:$0xf]
        %v234 = vld [vmem:[#allocation5 + $0x20] sm:$0xf]
        %v235 = vld [vmem:[#allocation5 + $0x24] sm:$0xf]
        %v236 = vld [vmem:[#allocation5 + $0x28] sm:$0xf]
        %v237 = vld [vmem:[#allocation5 + $0x2c] sm:$0xf]
        %v238 = vld [vmem:[#allocation5 + $0x30] sm:$0xf]
        %v239 = vld [vmem:[#allocation5 + $0x34] sm:$0xf]
        %v240 = vld [vmem:[#allocation5 + $0x38] sm:$0xf]
        %v241 = vld [vmem:[#allocation5 + $0x3c] sm:$0xf]
        %v250 = vunpack.c.l.b16 %v218
        %v251 = vunpack.c.l.b16 %v219
        %v252 = vunpack.c.l.b16 %v220
        %v253 = vunpack.c.l.b16 %v221
        %v254 = vunpack.c.l.b16 %v222
        %v255 = vunpack.c.l.b16 %v223
        %v256 = vunpack.c.l.b16 %v224
        %v257 = vunpack.c.l.b16 %v225
        %v258 = vpack.c.b16 %v251, %v250
        %v259 = vpack.c.b16 %v253, %v252
        %v260 = vpack.c.b16 %v255, %v254
        %v261 = vpack.c.b16 %v257, %v256
        %v282 = vunpack.c.l.b16 %v226
        %v283 = vunpack.c.l.b16 %v227
        %v284 = vunpack.c.l.b16 %v228
        %v285 = vunpack.c.l.b16 %v229
        %v286 = vunpack.c.l.b16 %v230
        %v287 = vunpack.c.l.b16 %v231
        %v288 = vunpack.c.l.b16 %v232
        %v289 = vunpack.c.l.b16 %v233
        %v290 = vunpack.c.l.b16 %v234
        %v291 = vunpack.c.l.b16 %v235
        %v292 = vunpack.c.l.b16 %v236
        %v293 = vunpack.c.l.b16 %v237
        %v294 = vunpack.c.l.b16 %v238
        %v295 = vunpack.c.l.b16 %v239
        %v296 = vunpack.c.l.b16 %v240
        %v297 = vunpack.c.l.b16 %v241
        %v298 = vpack.c.b16 %v283, %v282
        %v299 = vpack.c.b16 %v285, %v284
        %v300 = vpack.c.b16 %v287, %v286
        %v301 = vpack.c.b16 %v289, %v288
        %v302 = vpack.c.b16 %v291, %v290
        %v303 = vpack.c.b16 %v293, %v292
        %v304 = vpack.c.b16 %v295, %v294
        %v305 = vpack.c.b16 %v297, %v296
        %314 = vmatprep.subr.bf16.mxu0 0
        %315 = vmatpush1.bf16.msra.mxu0 %v298
        %316 = vmatprep.subr.bf16.mxu0 0
        %317 = vmatpush1.bf16.msra.mxu0 %v299
        %318 = vmatprep.subr.bf16.mxu0 0
        %319 = vmatpush1.bf16.msra.mxu0 %v300
        %320 = vmatprep.subr.bf16.mxu0 0
        %321 = vmatpush1.bf16.msra.mxu0 %v301
        %322 = vmatprep.subr.bf16.mxu0 0
        %323 = vmatpush1.bf16.msra.mxu0 %v302
        %324 = vmatprep.subr.bf16.mxu0 0
        %325 = vmatpush1.bf16.msra.mxu0 %v303
        %326 = vmatprep.subr.bf16.mxu0 0
        %327 = vmatpush1.bf16.msra.mxu0 %v304
        %328 = vmatprep.subr.bf16.mxu0 0
        %329 = vmatpush1.bf16.msra.mxu0 %v305
        %330 = vmatprep.subr.bf16.mxu0 0
        %331 = vmatpush1.bf16.msra.mxu0 0
        %332 = vmatprep.subr.bf16.mxu0 0
        %333 = vmatpush1.bf16.msra.mxu0 0
        %334 = vmatprep.subr.bf16.mxu0 0
        %335 = vmatpush1.bf16.msra.mxu0 0
        %336 = vmatprep.subr.bf16.mxu0 0
        %337 = vmatpush1.bf16.msra.mxu0 0
        %338 = vmatprep.subr.bf16.mxu0 0
        %339 = vmatpush1.bf16.msra.mxu0 0
        %340 = vmatprep.subr.bf16.mxu0 0
        %341 = vmatpush1.bf16.msra.mxu0 0
        %342 = vmatprep.subr.bf16.mxu0 0
        %343 = vmatpush1.bf16.msra.mxu0 0
        %344 = vmatprep.subr.bf16.mxu0 0
        %345 = vmatpush1.bf16.msra.mxu0 0
        %346 = vmatprep.mubr.bf16.mxu0 0
        %347 = vmatmul.mubr.bf16.gmra.mrb[0].mxu0 %v258
        %v348 = vpop.f32.mrb[0].mxu0
        %v349 = vadd.f32 0.0, %v348
        %v350 = vpop.f32.mrb[0].mxu0
        %v351 = vpop.f32.mrb[0].mxu0
        %v352 = vadd.f32 0.0, %v351
        %v353 = vpop.f32.mrb[0].mxu0
        %354 = vmatprep.mubr.bf16.mxu0 0
        %355 = vmatmul.mubr.bf16.gmra.mrb[0].mxu0 %v259
        %v356 = vpop.f32.mrb[0].mxu0
        %v357 = vadd.f32 0.0, %v356
        %v358 = vpop.f32.mrb[0].mxu0
        %v359 = vpop.f32.mrb[0].mxu0
        %v360 = vadd.f32 0.0, %v359
        %v361 = vpop.f32.mrb[0].mxu0
        %362 = vmatprep.mubr.bf16.mxu0 0
        %363 = vmatmul.mubr.bf16.gmra.mrb[0].mxu0 %v260
        %v364 = vpop.f32.mrb[0].mxu0
        %v365 = vadd.f32 0.0, %v364
        %v366 = vpop.f32.mrb[0].mxu0
        %v367 = vpop.f32.mrb[0].mxu0
        %v368 = vadd.f32 0.0, %v367
        %v369 = vpop.f32.mrb[0].mxu0
        %370 = vmatprep.mubr.bf16.mxu0 0
        %371 = vmatmul.mubr.bf16.gmra.mrb[0].mxu0 %v261
        %v372 = vpop.f32.mrb[0].mxu0
        %v373 = vadd.f32 0.0, %v372
        %v374 = vpop.f32.mrb[0].mxu0
        %v375 = vpop.f32.mrb[0].mxu0
        %v376 = vadd.f32 0.0, %v375
        %v377 = vpop.f32.mrb[0].mxu0
        %378 = vdwg.mxu0
        %379 = vst [vmem:[%s207] sm:$0xff] %v349
        %380 = vst [vmem:[%s207 + $0x8] sm:$0xff] %v352
        %381 = vst [vmem:[%s207 + $0x10] sm:$0xff] %v357
        %382 = vst [vmem:[%s207 + $0x18] sm:$0xff] %v360
        %383 = vst [vmem:[%s207 + $0x20] sm:$0xff] %v365
        %384 = vst [vmem:[%s207 + $0x28] sm:$0xff] %v368
        %385 = vst [vmem:[%s207 + $0x30] sm:$0xff] %v373
        %386 = vst [vmem:[%s207 + $0x38] sm:$0xff] %v376
        %v387 = vadd.f32 %v349, %v352
        %v388 = vadd.f32 %v387, %v357
        %v389 = vadd.f32 %v388, %v360
        %v390 = vadd.f32 %v389, %v365
        %v391 = vadd.f32 %v390, %v368
        %v392 = vadd.f32 %v391, %v373
        %v393 = vadd.f32 %v392, %v376
        %v394 = vrot.slane %v393, 4
        %v395 = vadd.f32 %v393, %v394
        %v396 = vrot.slane %v395, 2
        %v397 = vadd.f32 %v395, %v396
        %v398 = vrot.slane %v397, 1
        %v399 = vadd.f32 %v397, %v398
        %v400 = vmul.f32 %v349, %v349
        %v401 = vmul.f32 %v352, %v352
        %v402 = vmul.f32 %v357, %v357
        %v403 = vmul.f32 %v360, %v360
        %v404 = vmul.f32 %v365, %v365
        %v405 = vmul.f32 %v368, %v368
        %v406 = vmul.f32 %v373, %v373
        %v407 = vmul.f32 %v376, %v376
        %v408 = vadd.f32 %v400, %v401
        %v409 = vadd.f32 %v408, %v402
        %v410 = vadd.f32 %v409, %v403
        %v411 = vadd.f32 %v410, %v404
        %v412 = vadd.f32 %v411, %v405
        %v413 = vadd.f32 %v412, %v406
        %v414 = vadd.f32 %v413, %v407
        %v415 = vrot.slane %v414, 4
        %v416 = vadd.f32 %v414, %v415
        %v417 = vrot.slane %v416, 2
        %v418 = vadd.f32 %v416, %v417
        %v419 = vrot.slane %v418, 1
        %v420 = vadd.f32 %v418, %v419
        %vm421 = vcmask 1040384
        %v422 = vsel %vm421, %v399, %v420
        %423 = vst [vmem:[%s214] sm:$0x3] %v422
        %s424 = sand.u32 %s80, 1
        %s425 = scalar_lea.sflag [#allocation4], %s424
        %s426 = sand.u32 %s80, 1
        %s427 = smul.addr %s426, 64
        %s428 = scalar_lea.vmem [#allocation7], %s427
        %s429 = sand.u32 %s106, 1
        %s430 = scalar_lea.sflag [#allocation9], %s429
        %s431 = sand.u32 %s106, 1
        %s432 = smul.addr %s431, 2
        %s433 = scalar_lea.vmem [#allocation8], %s432
        // Predicated region
        $region37: #{tpu_custom_call.1} parent=27 // pred_check
          %p434 = pneg %p90
        $region38: #{tpu_custom_call.1} parent=27 // pred_check_branch
          %436 = sbr.rel (%p434) target = $region40
        $region39: #{tpu_custom_call.1} parent=27 // pred_region
          %s437 = smul.u32 8, %s25
          %s439 = ssub.s32 1024, 1024
          %440 = vsyncadd %s425, %s439
          %s441 = smul.addr %s437, 128
          %s442 = scalar_lea.hbm %s2, %s441
          %s443 = sshll.u32 %s428, 4
          %s444 = int_to_ptr.vmem [resolvable:$true] %s443
          %449 = dma.vmem_to_hbm [thread:$0]  %s444, 1024, %s442, %s425, 128, 128, 8
        $region40: #{tpu_custom_call.1} parent=27 // pred_fallthru
          _
        // Predicated region
        $region41: #{tpu_custom_call.1} parent=27 // pred_check
          %p450 = pneg %p116
        $region42: #{tpu_custom_call.1} parent=27 // pred_check_branch
          %452 = sbr.rel (%p450) target = $region44
        $region43: #{tpu_custom_call.1} parent=27 // pred_region
          %s454 = ssub.s32 32, 32
          %455 = vsyncadd %s430, %s454
          %s456 = smul.addr %s25, 32
          %s457 = scalar_lea.hbm %s3, %s456
          %s459 = sshll.u32 %s433, 4
          %s460 = int_to_ptr.vmem [resolvable:$true] %s459
          %462 = dma.vmem_to_hbm [thread:$0]  %s460, 32, %s457, %s430
        $region44: #{tpu_custom_call.1} parent=27 // pred_fallthru
          _
      $region28: #{tpu_custom_call.1} parent=5 // pred_fallthru
        _
      %p463 = scmp.le.s32.totalorder 2, %s20
      // Predicated region
      $region45: #{tpu_custom_call.1} parent=5 // pred_check
        %p464 = pneg %p463
      $region46: #{tpu_custom_call.1} parent=5 // pred_check_branch
        %466 = sbr.rel (%p464) target = $region48
      $region47: #{tpu_custom_call.1} parent=5 // pred_region
        %s467 = ssub.s32 %s20, 2
        // Predicated region
        $region49: #{tpu_custom_call.1} parent=47 // pred_check
          %p468 = pneg %p96
        $region50: #{tpu_custom_call.1} parent=47 // pred_check_branch
          %470 = sbr.rel (%p468) target = $region52
        $region51: #{tpu_custom_call.1} parent=47 // pred_region
          %s471 = sand.u32 %s81, 1
          %s472 = scalar_lea.sflag [#allocation4], %s471
          %s473 = sand.u32 %s81, 1
          %s474 = smul.addr %s473, 64
          %s475 = scalar_lea.vmem [#allocation7], %s474
          %476 = dma.done %s472, 1024
        $region52: #{tpu_custom_call.1} parent=47 // pred_fallthru
          _
        // Predicated region
        $region53: #{tpu_custom_call.1} parent=47 // pred_check
          %p477 = pneg %p122
        $region54: #{tpu_custom_call.1} parent=47 // pred_check_branch
          %479 = sbr.rel (%p477) target = $region56
        $region55: #{tpu_custom_call.1} parent=47 // pred_region
          %s480 = sand.u32 %s107, 1
          %s481 = scalar_lea.sflag [#allocation9], %s480
          %s482 = sand.u32 %s107, 1
          %s483 = smul.addr %s482, 2
          %s484 = scalar_lea.vmem [#allocation8], %s483
          %485 = dma.done %s481, 32
        $region56: #{tpu_custom_call.1} parent=47 // pred_fallthru
          _
      $region48: #{tpu_custom_call.1} parent=5 // pred_fallthru
        _
    $region6: #{tpu_custom_call.1} parent=1 // loop_footer
      %s24 = sadd.s32 1, %s20
    $region7: #{tpu_custom_call.1} parent=1 // loop_footer_branch
      %19 = sbr.rel target = $region3
    $region8: #{tpu_custom_call.1} parent=1 // loop_exit
      _
    %486 = vsyncpa [#allocation3], 1
    %s487 = scalar_lea.sflag [#allocation3], 1
    %488 = vsyncpa %s487, 1
    %489 = vsyncpa [#allocation6], 1
    %490 = vsyncpa [#allocation4], 1
    %s491 = scalar_lea.sflag [#allocation4], 1
    %492 = vsyncpa %s491, 1
    %493 = vsyncpa [#allocation9], 1
    %s494 = scalar_lea.sflag [#allocation9], 1
    %495 = vsyncpa %s494, 1

</llo_original>
